<compile_context>
chip_gen: v7x
topology: tpu7x:2x2x1
jax: 0.10.0
libtpu: 0.0.40
codegen_flags: <defaults>
</compile_context>

<pallas_src>
import functools

import jax
import jax.numpy as jnp
from jax import lax
from jax.experimental import pallas as pl
from jax.experimental.pallas import tpu as pltpu

LANE = 128      # vreg lane width: keep last dims lane-dense
SUBLANE = 8
DEF_BT = 128    # default batch tile (rows per grid step)


def _round_up(n, m):
    return (n + m - 1) // m * m


def _pad2(a, rows, cols):
    r, c = a.shape
    if r == rows and c == cols:
        return a
    return jnp.pad(a, ((0, rows - r), (0, cols - c)))


def _pad_problem(x, params):
    """Zero-pad batch/feature/hidden dims so lanes are dense (multiples of 128)
    and the batch tiles cleanly.  Zero padding is exact for this vector field:
    padded hidden units see tanh(0 + 0) = 0 and padded output columns stay 0."""
    w1, b1, wt, w2, b2 = params
    B, D = x.shape
    H = w1.shape[1]
    Dp = _round_up(D, LANE)
    Hp = _round_up(H, LANE)
    bt = DEF_BT if B >= DEF_BT else _round_up(B, SUBLANE)
    Bp = _round_up(B, bt)
    xp = _pad2(x, Bp, Dp)
    pp = (_pad2(w1, Dp, Hp), _pad2(b1, 1, Hp), _pad2(wt, 1, Hp),
          _pad2(w2, Hp, Dp), _pad2(b2, 1, Dp))
    return xp, pp, (B, D, Bp, Dp, Hp, bt)


# ----------------------------------------------------------------------------
# forward: dx = model(t, x), one batch tile per grid step
# ----------------------------------------------------------------------------
def _vf_kernel(t_ref, x_ref, w1_ref, b1_ref, wt_ref, w2_ref, b2_ref, dx_ref):
    t = t_ref[0]                                          # scalar time (SMEM)
    bias = b1_ref[...] + t * wt_ref[...]                  # [1, Hp] hoisted bias
    h = jnp.tanh(
        jnp.dot(x_ref[...], w1_ref[...],
                preferred_element_type=jnp.float32) + bias)          # MXU + EUP
    dx = jnp.dot(h, w2_ref[...],
                 preferred_element_type=jnp.float32) + b2_ref[...]   # MXU
    dx_ref[...] = dx.astype(dx_ref.dtype)


@jax.jit
def cnf_forward(t, x, params):
    """CNF.forward(t, x) == model(t, x)."""
    xp, (w1, b1, wt, w2, b2), (B, D, Bp, Dp, Hp, bt) = _pad_problem(x, params)
    nb = Bp // bt
    t_arr = jnp.asarray(t, jnp.float32).reshape((1,))
    out = pl.pallas_call(
        _vf_kernel,
        out_shape=jax.ShapeDtypeStruct((Bp, Dp), jnp.float32),
        grid=(nb,),
        in_specs=[
            pl.BlockSpec(memory_space=pltpu.MemorySpace.SMEM),   # t (scalar)
            pl.BlockSpec((bt, Dp), lambda i: (i, 0)),            # x tile
            pl.BlockSpec((Dp, Hp), lambda i: (0, 0)),            # W1 (resident)
            pl.BlockSpec((1, Hp), lambda i: (0, 0)),             # b1
            pl.BlockSpec((1, Hp), lambda i: (0, 0)),             # wt
            pl.BlockSpec((Hp, Dp), lambda i: (0, 0)),            # W2 (resident)
            pl.BlockSpec((1, Dp), lambda i: (0, 0)),             # b2
        ],
        out_specs=pl.BlockSpec((bt, Dp), lambda i: (i, 0)),
        compiler_params=pltpu.CompilerParams(
            dimension_semantics=("parallel",)),
    )(t_arr, xp, w1, b1, wt, w2, b2)
    return out[:B, :D]


# ----------------------------------------------------------------------------
# encode: fixed-step Euler ODE solve 0 -> 1, whole loop fused in one kernel
# ----------------------------------------------------------------------------
def _make_encode_kernel(n_steps):
    dt = 1.0 / float(n_steps)

    def kernel(x_ref, w1_ref, b1_ref, wt_ref, w2_ref, b2_ref, z_ref):
        # Weights loaded once per batch tile; VMEM-resident across all steps.
        w1 = w1_ref[...]
        b1 = b1_ref[...]
        wt = wt_ref[...]
        w2 = w2_ref[...]
        b2 = b2_ref[...]

        def step(i, xi):
            t = i.astype(jnp.float32) * dt
            bias = b1 + t * wt                         # [1, Hp] once per step
            h = jnp.tanh(
                jnp.dot(xi, w1, preferred_element_type=jnp.float32) + bias)
            dx = jnp.dot(h, w2, preferred_element_type=jnp.float32) + b2
            return xi + dt * dx

        z_ref[...] = lax.fori_loop(
            0, n_steps, step, x_ref[...].astype(jnp.float32),
            unroll=(n_steps <= 8)).astype(z_ref.dtype)

    return kernel


@functools.partial(jax.jit, static_argnames=("n_steps",))
def cnf_encode(x, params, n_steps=8):
    """CNF.encode: integrate dx/dt = model(t, x) from t=0 to t=1.

    TODO(synk): the PyTorch code uses an adaptive `odeint`; a fixed-step Euler
    integrator (fused inside a single Pallas kernel) is used here.
    """
    xp, (w1, b1, wt, w2, b2), (B, D, Bp, Dp, Hp, bt) = _pad_problem(x, params)
    nb = Bp // bt
    out = pl.pallas_call(
        _make_encode_kernel(n_steps),
        out_shape=jax.ShapeDtypeStruct((Bp, Dp), jnp.float32),
        grid=(nb,),
        in_specs=[
            pl.BlockSpec((bt, Dp), lambda i: (i, 0)),            # x tile
            pl.BlockSpec((Dp, Hp), lambda i: (0, 0)),            # W1 (resident)
            pl.BlockSpec((1, Hp), lambda i: (0, 0)),             # b1
            pl.BlockSpec((1, Hp), lambda i: (0, 0)),             # wt
            pl.BlockSpec((Hp, Dp), lambda i: (0, 0)),            # W2 (resident)
            pl.BlockSpec((1, Dp), lambda i: (0, 0)),             # b2
        ],
        out_specs=pl.BlockSpec((bt, Dp), lambda i: (i, 0)),
        compiler_params=pltpu.CompilerParams(
            dimension_semantics=("parallel",)),
    )(xp, w1, b1, wt, w2, b2)
    return out[:B, :D]


# ----------------------------------------------------------------------------
# pure-JAX references
# ----------------------------------------------------------------------------
def cnf_forward_ref(t, x, params):
    w1, b1, wt, w2, b2 = params
    h = jnp.tanh(
        jnp.dot(x, w1, precision=jax.lax.Precision.HIGHEST)
        + b1 + jnp.float32(t) * wt)
    return jnp.dot(h, w2, precision=jax.lax.Precision.HIGHEST) + b2


def cnf_encode_ref(x, params, n_steps=8):
    dt = 1.0 / n_steps
    for i in range(n_steps):
        x = x + dt * cnf_forward_ref(i * dt, x, params)
    return x


def init_params(key, d, h):
    k1, k2, k3, k4, k5 = jax.random.split(key, 5)
    w1 = jax.random.normal(k1, (d, h), jnp.float32) * (1.0 / jnp.sqrt(d))
    b1 = jax.random.normal(k2, (1, h), jnp.float32) * 0.01
    wt = jax.random.normal(k3, (1, h), jnp.float32) * 0.1
    w2 = jax.random.normal(k4, (h, d), jnp.float32) * (1.0 / jnp.sqrt(h))
    b2 = jax.random.normal(k5, (1, d), jnp.float32) * 0.01
    return (w1, b1, wt, w2, b2)


if __name__ == "__main__":
    key = jax.random.PRNGKey(0)
    kx, kp, kx2, kp2 = jax.random.split(key, 4)

    # Primary, lane-dense shapes (D, H multiples of 128; batch tiled by 128).
    B, D, H = 256, 128, 256
    x = jax.random.normal(kx, (B, D), jnp.float32)
    params = init_params(kp, D, H)
    t = 0.25

    # forward == model(t, x) through the Pallas kernel.
    dx = cnf_forward(t, x, params)
    jax.block_until_ready(dx)
    dx_ref = cnf_forward_ref(t, x, params)
    assert dx.shape == (B, D) and dx.dtype == jnp.float32
    assert jnp.allclose(dx, dx_ref, atol=1e-4, rtol=1e-4)

    # encode: fused fixed-step Euler integration inside a single kernel.
    n_steps = 8
    z = cnf_encode(x, params, n_steps=n_steps)
    jax.block_until_ready(z)
    z_ref = cnf_encode_ref(x, params, n_steps=n_steps)
    assert z.shape == x.shape
    assert jnp.allclose(z, z_ref, atol=1e-3, rtol=1e-3)

    # Non-aligned small shapes exercise the zero-padding (lane-densifying) path.
    B2, D2, H2 = 8, 32, 64
    x2 = jax.random.normal(kx2, (B2, D2), jnp.float32)
    params2 = init_params(kp2, D2, H2)
    dx2 = cnf_forward(0.5, x2, params2)
    jax.block_until_ready(dx2)
    assert dx2.shape == (B2, D2)
    assert jnp.allclose(dx2, cnf_forward_ref(0.5, x2, params2),
                        atol=1e-4, rtol=1e-4)

    print("KERNEL_OK")
</pallas_src>

<mosaic_0001>
module attributes {stable_mosaic.version = 11 : i64} {
  func.func @_vf_kernel(%arg0: i32, %arg1: memref<1xf32, #tpu.memory_space<smem>>, %arg2: memref<128x128xf32, #tpu.memory_space<vmem>>, %arg3: memref<128x256xf32, #tpu.memory_space<vmem>>, %arg4: memref<1x256xf32, #tpu.memory_space<vmem>>, %arg5: memref<1x256xf32, #tpu.memory_space<vmem>>, %arg6: memref<256x128xf32, #tpu.memory_space<vmem>>, %arg7: memref<1x128xf32, #tpu.memory_space<vmem>>, %arg8: memref<128x128xf32, #tpu.memory_space<vmem>>) attributes {dimension_semantics = [#tpu.dimension_semantics<parallel>], iteration_bounds = array<i64: 2>, scalar_prefetch = 0 : i64, scratch_operands = 0 : i64, tpu.core_type = #tpu.core_type<tc>, window_params = [{transform_indices = @transform_0, window_bounds = array<i64: 1>}, {transform_indices = @transform_1, window_bounds = array<i64: 128, 128>}, {pipeline_mode = #tpu.pipeline_mode<synchronous>, transform_indices = @transform_2, window_bounds = array<i64: 128, 256>}, {pipeline_mode = #tpu.pipeline_mode<synchronous>, transform_indices = @transform_3, window_bounds = array<i64: 1, 256>}, {pipeline_mode = #tpu.pipeline_mode<synchronous>, transform_indices = @transform_4, window_bounds = array<i64: 1, 256>}, {pipeline_mode = #tpu.pipeline_mode<synchronous>, transform_indices = @transform_5, window_bounds = array<i64: 256, 128>}, {pipeline_mode = #tpu.pipeline_mode<synchronous>, transform_indices = @transform_6, window_bounds = array<i64: 1, 128>}, {transform_indices = @transform_7, window_bounds = array<i64: 128, 128>}]} {
    %c0 = arith.constant 0 : index
    %0 = memref.load %arg1[%c0] : memref<1xf32, #tpu.memory_space<smem>>
    %c0_0 = arith.constant 0 : index
    %c0_1 = arith.constant 0 : index
    %1 = vector.load %arg4[%c0_0, %c0_1] : memref<1x256xf32, #tpu.memory_space<vmem>>, vector<1x256xf32>
    %c0_2 = arith.constant 0 : index
    %c0_3 = arith.constant 0 : index
    %2 = vector.load %arg5[%c0_2, %c0_3] : memref<1x256xf32, #tpu.memory_space<vmem>>, vector<1x256xf32>
    %3 = vector.broadcast %0 : f32 to vector<1x256xf32>
    %4 = arith.mulf %3, %2 : vector<1x256xf32>
    %5 = arith.addf %1, %4 : vector<1x256xf32>
    %c0_4 = arith.constant 0 : index
    %c0_5 = arith.constant 0 : index
    %6 = vector.load %arg2[%c0_4, %c0_5] : memref<128x128xf32, #tpu.memory_space<vmem>>, vector<128x128xf32>
    %c0_6 = arith.constant 0 : index
    %c0_7 = arith.constant 0 : index
    %7 = vector.load %arg3[%c0_6, %c0_7] : memref<128x256xf32, #tpu.memory_space<vmem>>, vector<128x256xf32>
    %cst = arith.constant dense<0.000000e+00> : vector<128x256xf32>
    %8 = tpu.matmul %6, %7, %cst {dimension_numbers = #tpu.dot_dimension_numbers<[1], [0], [0], [1], [0, 0, 1, 1], [], []>} : vector<128x128xf32>, vector<128x256xf32>, vector<128x256xf32> -> vector<128x256xf32>
    %9 = vector.broadcast %5 : vector<1x256xf32> to vector<128x256xf32>
    %10 = arith.addf %8, %9 : vector<128x256xf32>
    %11 = math.tanh %10 : vector<128x256xf32>
    %c0_8 = arith.constant 0 : index
    %c0_9 = arith.constant 0 : index
    %12 = vector.load %arg6[%c0_8, %c0_9] : memref<256x128xf32, #tpu.memory_space<vmem>>, vector<256x128xf32>
    %cst_10 = arith.constant dense<0.000000e+00> : vector<128x128xf32>
    %13 = tpu.matmul %11, %12, %cst_10 {dimension_numbers = #tpu.dot_dimension_numbers<[1], [0], [0], [1], [0, 0, 1, 1], [], []>} : vector<128x256xf32>, vector<256x128xf32>, vector<128x128xf32> -> vector<128x128xf32>
    %c0_11 = arith.constant 0 : index
    %c0_12 = arith.constant 0 : index
    %14 = vector.load %arg7[%c0_11, %c0_12] : memref<1x128xf32, #tpu.memory_space<vmem>>, vector<1x128xf32>
    %15 = vector.broadcast %14 : vector<1x128xf32> to vector<128x128xf32>
    %16 = arith.addf %13, %15 : vector<128x128xf32>
    %c0_13 = arith.constant 0 : index
    %c0_14 = arith.constant 0 : index
    %17 = vector.load %arg8[%c0_13, %c0_14] : memref<128x128xf32, #tpu.memory_space<vmem>>, vector<128x128xf32>
    tpu.vector_store %arg8[%c0_13, %c0_14], %16 {strides = array<i32>} : memref<128x128xf32, #tpu.memory_space<vmem>>, vector<128x128xf32>,
    return
  }
  func.func @transform_0(%arg0: i32) -> i32 {
    %c0_i32 = arith.constant 0 : i32
    %c0_i32_0 = arith.constant 0 : i32
    return %c0_i32 : i32
  }
  func.func @transform_1(%arg0: i32) -> (i32, i32) {
    %c0_i32 = arith.constant 0 : i32
    %c0_i32_0 = arith.constant 0 : i32
    return %arg0, %c0_i32 : i32, i32
  }
  func.func @transform_2(%arg0: i32) -> (i32, i32) {
    %c0_i32 = arith.constant 0 : i32
    %c0_i32_0 = arith.constant 0 : i32
    %c0_i32_1 = arith.constant 0 : i32
    return %c0_i32, %c0_i32_0 : i32, i32
  }
  func.func @transform_3(%arg0: i32) -> (i32, i32) {
    %c0_i32 = arith.constant 0 : i32
    %c0_i32_0 = arith.constant 0 : i32
    %c0_i32_1 = arith.constant 0 : i32
    return %c0_i32, %c0_i32_0 : i32, i32
  }
  func.func @transform_4(%arg0: i32) -> (i32, i32) {
    %c0_i32 = arith.constant 0 : i32
    %c0_i32_0 = arith.constant 0 : i32
    %c0_i32_1 = arith.constant 0 : i32
    return %c0_i32, %c0_i32_0 : i32, i32
  }
  func.func @transform_5(%arg0: i32) -> (i32, i32) {
    %c0_i32 = arith.constant 0 : i32
    %c0_i32_0 = arith.constant 0 : i32
    %c0_i32_1 = arith.constant 0 : i32
    return %c0_i32, %c0_i32_0 : i32, i32
  }
  func.func @transform_6(%arg0: i32) -> (i32, i32) {
    %c0_i32 = arith.constant 0 : i32
    %c0_i32_0 = arith.constant 0 : i32
    %c0_i32_1 = arith.constant 0 : i32
    return %c0_i32, %c0_i32_0 : i32, i32
  }
  func.func @transform_7(%arg0: i32) -> (i32, i32) {
    %c0_i32 = arith.constant 0 : i32
    %c0_i32_0 = arith.constant 0 : i32
    return %arg0, %c0_i32 : i32, i32
  }
}

</mosaic_0001>

<llo_original>
// kernel: cnf_forward.1
$region0: #{cnf_forward.1}
  #allocation0 [shape = 'u32[]', space=smem, size = 0x4, offset = 0x4, fixed_abs, tag = 'smem constant byte address 0x4 - core index']
  #allocation1 [shape = 'u32[144,128]{1,0:T(1,128)}', space=vmem, size = 0x12000, scoped, tag = 'internal scratch']
  #allocation2 [shape = 'f32[1]{0:T(128)S(6)}', space=smem, size = 0x200, scoped, tag = 'scoped memory for cnf_forward.1']
  %s0 = inlined_call_operand.<no memory space> [shape: f32[1], index: 0, kind: input, shape index: {}]
  %s1 = inlined_call_operand.hbm [shape: f32[256,128], index: 1, kind: input, shape index: {}]
  %s2 = inlined_call_operand.hbm [shape: f32[128,256], index: 2, kind: input, shape index: {}]
  %s3 = inlined_call_operand.vmem [shape: f32[1,256], index: 3, kind: input, shape index: {}]
  %s4 = inlined_call_operand.vmem [shape: f32[1,256], index: 4, kind: input, shape index: {}]
  %s5 = inlined_call_operand.hbm [shape: f32[256,128], index: 5, kind: input, shape index: {}]
  %s6 = inlined_call_operand.vmem [shape: f32[1,128], index: 6, kind: input, shape index: {}]
  %s7 = inlined_call_operand.hbm [shape: f32[256,128], index: 7, kind: output, shape index: {}]
  %s8 = sld [smem:[#allocation0]]
  $region73: #{cnf_forward.1} parent=0
    _
  %s10 = ssub.s32 1, %s8
  %s11 = scalar_select 0, %s10, %s8
  %12 = sst [smem:[#allocation2]] %s0
  $region1: #{cnf_forward.1} parent=0
    #allocation3 [shape = 'u8[131072]{0}', space=vmem, size = 0x20000, scoped, tag = 'input window, operand 1']
    #allocation4 [shape = 's32[2]{0}', space=sflag, size = 0x8, scoped, tag = 'scoped memory for cnf_forward.1']
    #allocation5 [shape = 's32[2]{0}', space=sflag, size = 0x8, scoped, tag = 'scoped memory for cnf_forward.1']
    #allocation6 [shape = 'u8[131072]{0}', space=vmem, size = 0x20000, scoped, tag = 'input window, operand 2, single buffered']
    #allocation7 [shape = 's32[1]{0}', space=sflag, size = 0x4, scoped, tag = 'scoped memory for cnf_forward.1']
    #allocation8 [shape = 'u8[131072]{0}', space=vmem, size = 0x20000, scoped, tag = 'input window, operand 5, single buffered']
    #allocation9 [shape = 'u8[131072]{0}', space=vmem, size = 0x20000, scoped, tag = 'output window, operand 0']
    %13 = vsyncpa [#allocation4], 0
    %s14 = scalar_lea.sflag [#allocation4], 1
    %15 = vsyncpa %s14, 0
    %16 = vsyncpa [#allocation7], 0
    %17 = vsyncpa [#allocation5], 0
    %s18 = scalar_lea.sflag [#allocation5], 1
    %19 = vsyncpa %s18, 0
    loop: start=0, step=1, limit=4
    $region2: #{cnf_forward.1} parent=1 // loop_pre_header
      _
    $region3: #{cnf_forward.1} parent=1 // loop_header
      %s21 = sphi 0, %s25
      %p22 = scmp.ge.s32.totalorder %s21, 4
      %s29 = sphi 0, %s29
      %s31 = sphi 0, %s29
      %s32 = sphi 0, %s31
      %s46 = sphi 0, %s32
      %s52 = sphi 0, %s54
      %s55 = sphi 0, %s52
      %s56 = sphi 0, %s55
      %s72 = sphi 0, %s56
      %s76 = sphi 0, %s76
      %s78 = sphi 0, %s76
      %s79 = sphi 0, %s78
      %s93 = sphi 0, %s79
      %s97 = sphi 0, %s97
      %s99 = sphi 0, %s97
      %s100 = sphi 0, %s99
      %s114 = sphi 0, %s100
      %s118 = sphi 0, %s118
      %s120 = sphi 0, %s118
      %s121 = sphi 0, %s120
      %s135 = sphi 0, %s121
      %s139 = sphi 0, %s139
      %s141 = sphi 0, %s139
      %s142 = sphi 0, %s141
      %s156 = sphi 0, %s142
      %s160 = sphi 0, %s160
      %s162 = sphi 0, %s160
      %s163 = sphi 0, %s162
      %s177 = sphi 0, %s163
      %s183 = sphi 0, %s185
      %s186 = sphi 0, %s183
      %s187 = sphi 0, %s186
      %s203 = sphi 0, %s187
    $region4: #{cnf_forward.1} parent=1 // loop_header_branch
      %24 = sbr.rel (%p22) target = $region8
    $region5: #{cnf_forward.1} parent=1 // loop_body
      %s26 = ssub.s32 %s21, 1
      %s27 = ssub.s32 %s21, 2
      %s28 = sadd.s32 %s21, 1
      %s30 = sadd.s32 %s29, 1
      %p33 = scmp.eq.s32.totalorder %s21, 1
      %p34 = scmp.ne.s32.totalorder %s29, %s31
      %p35 = scmp.eq.s32.totalorder %s21, 0
      %p36 = por %p34, %p35
      %p37 = scmp.ne.s32.totalorder %s29, %s31
      %p38 = scmp.eq.s32.totalorder %s26, 1
      %p39 = por %p37, %p38
      %p40 = scmp.ne.s32.totalorder %s31, %s32
      %p41 = scmp.eq.s32.totalorder %s26, 0
      %p42 = por %p40, %p41
      %p43 = scmp.ne.s32.totalorder %s31, %s32
      %p44 = scmp.eq.s32.totalorder %s27, 1
      %p45 = por %p43, %p44
      %p47 = scmp.ne.s32.totalorder %s32, %s46
      %p48 = scmp.eq.s32.totalorder %s27, 0
      %p49 = por %p47, %p48
      %s50 = ssub.s32 %s21, %s28
      %p51 = scmp.eq.s32.totalorder %s50, 0
      %s53 = sadd.s32 %s52, 1
      %s54 = scalar_select %p51, %s52, %s53
      %p57 = pneg %p51
      %p58 = scmp.eq.s32.totalorder %s21, 1
      %p59 = por %p57, %p58
      %p60 = scmp.ne.s32.totalorder %s52, %s55
      %p61 = scmp.eq.s32.totalorder %s21, 0
      %p62 = por %p60, %p61
      %p63 = scmp.ne.s32.totalorder %s52, %s55
      %p64 = scmp.eq.s32.totalorder %s26, 1
      %p65 = por %p63, %p64
      %p66 = scmp.ne.s32.totalorder %s55, %s56
      %p67 = scmp.eq.s32.totalorder %s26, 0
      %p68 = por %p66, %p67
      %p69 = scmp.ne.s32.totalorder %s55, %s56
      %p70 = scmp.eq.s32.totalorder %s27, 1
      %p71 = por %p69, %p70
      %p73 = scmp.ne.s32.totalorder %s56, %s72
      %p74 = scmp.eq.s32.totalorder %s27, 0
      %p75 = por %p73, %p74
      %s77 = sadd.s32 %s76, 1
      %p80 = scmp.eq.s32.totalorder %s21, 1
      %p81 = scmp.ne.s32.totalorder %s76, %s78
      %p82 = scmp.eq.s32.totalorder %s21, 0
      %p83 = por %p81, %p82
      %p84 = scmp.ne.s32.totalorder %s76, %s78
      %p85 = scmp.eq.s32.totalorder %s26, 1
      %p86 = por %p84, %p85
      %p87 = scmp.ne.s32.totalorder %s78, %s79
      %p88 = scmp.eq.s32.totalorder %s26, 0
      %p89 = por %p87, %p88
      %p90 = scmp.ne.s32.totalorder %s78, %s79
      %p91 = scmp.eq.s32.totalorder %s27, 1
      %p92 = por %p90, %p91
      %p94 = scmp.ne.s32.totalorder %s79, %s93
      %p95 = scmp.eq.s32.totalorder %s27, 0
      %p96 = por %p94, %p95
      %s98 = sadd.s32 %s97, 1
      %p101 = scmp.eq.s32.totalorder %s21, 1
      %p102 = scmp.ne.s32.totalorder %s97, %s99
      %p103 = scmp.eq.s32.totalorder %s21, 0
      %p104 = por %p102, %p103
      %p105 = scmp.ne.s32.totalorder %s97, %s99
      %p106 = scmp.eq.s32.totalorder %s26, 1
      %p107 = por %p105, %p106
      %p108 = scmp.ne.s32.totalorder %s99, %s100
      %p109 = scmp.eq.s32.totalorder %s26, 0
      %p110 = por %p108, %p109
      %p111 = scmp.ne.s32.totalorder %s99, %s100
      %p112 = scmp.eq.s32.totalorder %s27, 1
      %p113 = por %p111, %p112
      %p115 = scmp.ne.s32.totalorder %s100, %s114
      %p116 = scmp.eq.s32.totalorder %s27, 0
      %p117 = por %p115, %p116
      %s119 = sadd.s32 %s118, 1
      %p122 = scmp.eq.s32.totalorder %s21, 1
      %p123 = scmp.ne.s32.totalorder %s118, %s120
      %p124 = scmp.eq.s32.totalorder %s21, 0
      %p125 = por %p123, %p124
      %p126 = scmp.ne.s32.totalorder %s118, %s120
      %p127 = scmp.eq.s32.totalorder %s26, 1
      %p128 = por %p126, %p127
      %p129 = scmp.ne.s32.totalorder %s120, %s121
      %p130 = scmp.eq.s32.totalorder %s26, 0
      %p131 = por %p129, %p130
      %p132 = scmp.ne.s32.totalorder %s120, %s121
      %p133 = scmp.eq.s32.totalorder %s27, 1
      %p134 = por %p132, %p133
      %p136 = scmp.ne.s32.totalorder %s121, %s135
      %p137 = scmp.eq.s32.totalorder %s27, 0
      %p138 = por %p136, %p137
      %s140 = sadd.s32 %s139, 1
      %p143 = scmp.eq.s32.totalorder %s21, 1
      %p144 = scmp.ne.s32.totalorder %s139, %s141
      %p145 = scmp.eq.s32.totalorder %s21, 0
      %p146 = por %p144, %p145
      %p147 = scmp.ne.s32.totalorder %s139, %s141
      %p148 = scmp.eq.s32.totalorder %s26, 1
      %p149 = por %p147, %p148
      %p150 = scmp.ne.s32.totalorder %s141, %s142
      %p151 = scmp.eq.s32.totalorder %s26, 0
      %p152 = por %p150, %p151
      %p153 = scmp.ne.s32.totalorder %s141, %s142
      %p154 = scmp.eq.s32.totalorder %s27, 1
      %p155 = por %p153, %p154
      %p157 = scmp.ne.s32.totalorder %s142, %s156
      %p158 = scmp.eq.s32.totalorder %s27, 0
      %p159 = por %p157, %p158
      %s161 = sadd.s32 %s160, 1
      %p164 = scmp.eq.s32.totalorder %s21, 1
      %p165 = scmp.ne.s32.totalorder %s160, %s162
      %p166 = scmp.eq.s32.totalorder %s21, 0
      %p167 = por %p165, %p166
      %p168 = scmp.ne.s32.totalorder %s160, %s162
      %p169 = scmp.eq.s32.totalorder %s26, 1
      %p170 = por %p168, %p169
      %p171 = scmp.ne.s32.totalorder %s162, %s163
      %p172 = scmp.eq.s32.totalorder %s26, 0
      %p173 = por %p171, %p172
      %p174 = scmp.ne.s32.totalorder %s162, %s163
      %p175 = scmp.eq.s32.totalorder %s27, 1
      %p176 = por %p174, %p175
      %p178 = scmp.ne.s32.totalorder %s163, %s177
      %p179 = scmp.eq.s32.totalorder %s27, 0
      %p180 = por %p178, %p179
      %s181 = ssub.s32 %s21, %s28
      %p182 = scmp.eq.s32.totalorder %s181, 0
      %s184 = sadd.s32 %s183, 1
      %s185 = scalar_select %p182, %s183, %s184
      %p188 = pneg %p182
      %p189 = scmp.eq.s32.totalorder %s21, 1
      %p190 = por %p188, %p189
      %p191 = scmp.ne.s32.totalorder %s183, %s186
      %p192 = scmp.eq.s32.totalorder %s21, 0
      %p193 = por %p191, %p192
      %p194 = scmp.ne.s32.totalorder %s183, %s186
      %p195 = scmp.eq.s32.totalorder %s26, 1
      %p196 = por %p194, %p195
      %p197 = scmp.ne.s32.totalorder %s186, %s187
      %p198 = scmp.eq.s32.totalorder %s26, 0
      %p199 = por %p197, %p198
      %p200 = scmp.ne.s32.totalorder %s186, %s187
      %p201 = scmp.eq.s32.totalorder %s27, 1
      %p202 = por %p200, %p201
      %p204 = scmp.ne.s32.totalorder %s187, %s203
      %p205 = scmp.eq.s32.totalorder %s27, 0
      %p206 = por %p204, %p205
      %p207 = scmp.le.s32.totalorder 1, %s21
      %p208 = scmp.lt.s32.totalorder %s21, 3
      %p209 = pnand %p207, %p208
      %p210 = pneg %p209
      // Predicated region
      $region9: #{cnf_forward.1} parent=5 // pred_check
        _
      $region10: #{cnf_forward.1} parent=5 // pred_check_branch
        %212 = sbr.rel (%p209) target = $region12
      $region11: #{cnf_forward.1} parent=5 // pred_region
        %s213 = ssub.s32 %s21, 1
        // Predicated region
        $region13: #{cnf_forward.1} parent=11 // pred_check
          %p214 = pneg %p42
        $region14: #{cnf_forward.1} parent=11 // pred_check_branch
          %216 = sbr.rel (%p214) target = $region16
        $region15: #{cnf_forward.1} parent=11 // pred_region
          _
        $region16: #{cnf_forward.1} parent=11 // pred_fallthru
          _
        // Predicated region
        $region17: #{cnf_forward.1} parent=11 // pred_check
          %p217 = pneg %p89
        $region18: #{cnf_forward.1} parent=11 // pred_check_branch
          %219 = sbr.rel (%p217) target = $region20
        $region19: #{cnf_forward.1} parent=11 // pred_region
          %s221 = ssub.s32 4096, 4096
          %222 = vsyncadd [#allocation7], %s221
          %s223 = sshll.u32 [#allocation6], 4
          %s224 = int_to_ptr.vmem [resolvable:$true] %s223
          %229 = dma.hbm_to_vmem [thread:$0]  %s2, 4096, %s224, [#allocation7], 256, 256, 16
        $region20: #{cnf_forward.1} parent=11 // pred_fallthru
          _
        // Predicated region
        $region21: #{cnf_forward.1} parent=11 // pred_check
          %p230 = pneg %p110
        $region22: #{cnf_forward.1} parent=11 // pred_check_branch
          %232 = sbr.rel (%p230) target = $region24
        $region23: #{cnf_forward.1} parent=11 // pred_region
          _
        $region24: #{cnf_forward.1} parent=11 // pred_fallthru
          _
        // Predicated region
        $region25: #{cnf_forward.1} parent=11 // pred_check
          %p233 = pneg %p131
        $region26: #{cnf_forward.1} parent=11 // pred_check_branch
          %235 = sbr.rel (%p233) target = $region28
        $region27: #{cnf_forward.1} parent=11 // pred_region
          _
        $region28: #{cnf_forward.1} parent=11 // pred_fallthru
          _
        // Predicated region
        $region29: #{cnf_forward.1} parent=11 // pred_check
          %p236 = pneg %p152
        $region30: #{cnf_forward.1} parent=11 // pred_check_branch
          %238 = sbr.rel (%p236) target = $region32
        $region31: #{cnf_forward.1} parent=11 // pred_region
          %s240 = ssub.s32 4096, 4096
          %241 = vsyncadd [#allocation7], %s240
          %s242 = sshll.u32 [#allocation8], 4
          %s243 = int_to_ptr.vmem [resolvable:$true] %s242
          %248 = dma.hbm_to_vmem [thread:$0]  %s5, 4096, %s243, [#allocation7], 128, 128, 8
        $region32: #{cnf_forward.1} parent=11 // pred_fallthru
          _
        // Predicated region
        $region33: #{cnf_forward.1} parent=11 // pred_check
          %p249 = pneg %p173
        $region34: #{cnf_forward.1} parent=11 // pred_check_branch
          %251 = sbr.rel (%p249) target = $region36
        $region35: #{cnf_forward.1} parent=11 // pred_region
          _
        $region36: #{cnf_forward.1} parent=11 // pred_fallthru
          _
      $region12: #{cnf_forward.1} parent=5 // pred_fallthru
        _
      %p252 = scmp.lt.s32.totalorder %s21, 2
      // Predicated region
      $region37: #{cnf_forward.1} parent=5 // pred_check
        %p253 = pneg %p252
      $region38: #{cnf_forward.1} parent=5 // pred_check_branch
        %255 = sbr.rel (%p253) target = $region40
      $region39: #{cnf_forward.1} parent=5 // pred_region
        // Predicated region
        $region41: #{cnf_forward.1} parent=39 // pred_check
          %p256 = pneg %p62
        $region42: #{cnf_forward.1} parent=39 // pred_check_branch
          %258 = sbr.rel (%p256) target = $region44
        $region43: #{cnf_forward.1} parent=39 // pred_region
          %s259 = sand.u32 %s52, 1
          %s260 = scalar_lea.sflag [#allocation4], %s259
          %s261 = sand.u32 %s52, 1
          %s262 = smul.addr %s261, 128
          %s263 = scalar_lea.vmem [#allocation3], %s262
          %s264 = smul.u32 16, %s21
          %s266 = ssub.s32 2048, 2048
          %267 = vsyncadd %s260, %s266
          %s268 = smul.addr %s264, 128
          %s269 = scalar_lea.hbm %s1, %s268
          %s270 = sshll.u32 %s263, 4
          %s271 = int_to_ptr.vmem [resolvable:$true] %s270
          %276 = dma.hbm_to_vmem [thread:$0]  %s269, 2048, %s271, %s260, 128, 128, 8
        $region44: #{cnf_forward.1} parent=39 // pred_fallthru
          _
      $region40: #{cnf_forward.1} parent=5 // pred_fallthru
        _
      %p277 = scmp.le.s32.totalorder 1, %s21
      %p278 = scmp.lt.s32.totalorder %s21, 3
      %p279 = pnand %p277, %p278
      %p280 = pneg %p279
      // Predicated region
      $region45: #{cnf_forward.1} parent=5 // pred_check
        _
      $region46: #{cnf_forward.1} parent=5 // pred_check_branch
        %282 = sbr.rel (%p279) target = $region48
      $region47: #{cnf_forward.1} parent=5 // pred_region
        %s283 = ssub.s32 %s21, 1
        %s284 = sand.u32 %s55, 1
        %s285 = scalar_lea.sflag [#allocation4], %s284
        %s286 = sand.u32 %s55, 1
        %s287 = smul.addr %s286, 128
        %s288 = scalar_lea.vmem [#allocation3], %s287
        // Predicated region
        $region49: #{cnf_forward.1} parent=47 // pred_check
          %p289 = pneg %p68
        $region50: #{cnf_forward.1} parent=47 // pred_check_branch
          %291 = sbr.rel (%p289) target = $region52
        $region51: #{cnf_forward.1} parent=47 // pred_region
          %292 = dma.done %s285, 2048
        $region52: #{cnf_forward.1} parent=47 // pred_fallthru
          _
        // Predicated region
        $region53: #{cnf_forward.1} parent=47 // pred_check
          %p293 = pneg %p89
        $region54: #{cnf_forward.1} parent=47 // pred_check_branch
          %295 = sbr.rel (%p293) target = $region56
        $region55: #{cnf_forward.1} parent=47 // pred_region
          %296 = dma.done [#allocation7], 4096
        $region56: #{cnf_forward.1} parent=47 // pred_fallthru
          _
        // Predicated region
        $region57: #{cnf_forward.1} parent=47 // pred_check
          %p297 = pneg %p152
        $region58: #{cnf_forward.1} parent=47 // pred_check_branch
          %299 = sbr.rel (%p297) target = $region60
        $region59: #{cnf_forward.1} parent=47 // pred_region
          %300 = dma.done [#allocation7], 4096
        $region60: #{cnf_forward.1} parent=47 // pred_fallthru
          _
        %p301 = pneg %p42
        %p302 = pneg %p39
        %s303 = sand.u32 %s55, 1
        %s304 = scalar_lea.sflag [#allocation4], %s303
        %s305 = sand.u32 %s55, 1
        %s306 = smul.addr %s305, 128
        %s307 = scalar_lea.vmem [#allocation3], %s306
        %p308 = pneg %p68
        %p309 = pneg %p65
        %p310 = pneg %p89
        %p311 = pneg %p86
        %p312 = pneg %p110
        %p313 = pneg %p107
        %p314 = pneg %p131
        %p315 = pneg %p128
        %p316 = pneg %p152
        %p317 = pneg %p149
        %p318 = pneg %p173
        %p319 = pneg %p170
        %p320 = pneg %p199
        %p321 = pneg %p196
        %s322 = sand.u32 %s186, 1
        %s323 = scalar_lea.sflag [#allocation5], %s322
        %s324 = sand.u32 %s186, 1
        %s325 = smul.addr %s324, 128
        %s326 = scalar_lea.vmem [#allocation9], %s325
        %s327 = smul.u32 16, %s26
        %s328 = smul.u32 16, %s26
        %s329 = sld [smem:[#allocation2]]
        %v330 = vld [vmem:[%s3] sm:$0x3]
        %v331 = vld [vmem:[%s4] sm:$0x3]
        %v332 = vstv %s329
        %v333 = vmul.f32 %v332, %v331
        %v334 = vadd.f32 %v330, %v333
        %v335 = vld [vmem:[%s288] sm:$0xff]
        %v336 = vld [vmem:[%s288 + $0x8] sm:$0xff]
        %v337 = vld [vmem:[%s288 + $0x10] sm:$0xff]
        %v338 = vld [vmem:[%s288 + $0x18] sm:$0xff]
        %v339 = vld [vmem:[%s288 + $0x20] sm:$0xff]
        %v340 = vld [vmem:[%s288 + $0x28] sm:$0xff]
        %v341 = vld [vmem:[%s288 + $0x30] sm:$0xff]
        %v342 = vld [vmem:[%s288 + $0x38] sm:$0xff]
        %v343 = vld [vmem:[%s288 + $0x40] sm:$0xff]
        %v344 = vld [vmem:[%s288 + $0x48] sm:$0xff]
        %v345 = vld [vmem:[%s288 + $0x50] sm:$0xff]
        %v346 = vld [vmem:[%s288 + $0x58] sm:$0xff]
        %v347 = vld [vmem:[%s288 + $0x60] sm:$0xff]
        %v348 = vld [vmem:[%s288 + $0x68] sm:$0xff]
        %v349 = vld [vmem:[%s288 + $0x70] sm:$0xff]
        %v350 = vld [vmem:[%s288 + $0x78] sm:$0xff]
        %v351 = vld [vmem:[#allocation6] sm:$0xff]
        %v352 = vld [vmem:[#allocation6 + $0x8] sm:$0xff]
        %v353 = vld [vmem:[#allocation6 + $0x10] sm:$0xff]
        %v354 = vld [vmem:[#allocation6 + $0x18] sm:$0xff]
        %v355 = vld [vmem:[#allocation6 + $0x20] sm:$0xff]
        %v356 = vld [vmem:[#allocation6 + $0x28] sm:$0xff]
        %v357 = vld [vmem:[#allocation6 + $0x30] sm:$0xff]
        %v358 = vld [vmem:[#allocation6 + $0x38] sm:$0xff]
        %v359 = vld [vmem:[#allocation6 + $0x40] sm:$0xff]
        %v360 = vld [vmem:[#allocation6 + $0x48] sm:$0xff]
        %v361 = vld [vmem:[#allocation6 + $0x50] sm:$0xff]
        %v362 = vld [vmem:[#allocation6 + $0x58] sm:$0xff]
        %v363 = vld [vmem:[#allocation6 + $0x60] sm:$0xff]
        %v364 = vld [vmem:[#allocation6 + $0x68] sm:$0xff]
        %v365 = vld [vmem:[#allocation6 + $0x70] sm:$0xff]
        %v366 = vld [vmem:[#allocation6 + $0x78] sm:$0xff]
        %v367 = vld [vmem:[#allocation6 + $0x80] sm:$0xff]
        %v368 = vld [vmem:[#allocation6 + $0x88] sm:$0xff]
        %v369 = vld [vmem:[#allocation6 + $0x90] sm:$0xff]
        %v370 = vld [vmem:[#allocation6 + $0x98] sm:$0xff]
        %v371 = vld [vmem:[#allocation6 + $0xa0] sm:$0xff]
        %v372 = vld [vmem:[#allocation6 + $0xa8] sm:$0xff]
        %v373 = vld [vmem:[#allocation6 + $0xb0] sm:$0xff]
        %v374 = vld [vmem:[#allocation6 + $0xb8] sm:$0xff]
        %v375 = vld [vmem:[#allocation6 + $0xc0] sm:$0xff]
        %v376 = vld [vmem:[#allocation6 + $0xc8] sm:$0xff]
        %v377 = vld [vmem:[#allocation6 + $0xd0] sm:$0xff]
        %v378 = vld [vmem:[#allocation6 + $0xd8] sm:$0xff]
        %v379 = vld [vmem:[#allocation6 + $0xe0] sm:$0xff]
        %v380 = vld [vmem:[#allocation6 + $0xe8] sm:$0xff]
        %v381 = vld [vmem:[#allocation6 + $0xf0] sm:$0xff]
        %v382 = vld [vmem:[#allocation6 + $0xf8] sm:$0xff]
        %v384 = vlaneseq
        %v385 = vshrl.u32 %v384, 7
        %v386 = vsub.s32 0, %v385
        %v387 = vrot.slane %v334, %v386
        %v388 = vlaneseq
        %v389 = vshrl.u32 %v388, 7
        %v390 = vsub.s32 1, %v389
        %v391 = vrot.slane %v334, %v390
        %394 = vmatprep.subr.mxu0 %v352
        %395 = vmatpush1.msra.mxu0 %v351
        %396 = vmatprep.subr.mxu0 %v354
        %397 = vmatpush1.msra.mxu0 %v353
        %398 = vmatprep.subr.mxu0 %v356
        %399 = vmatpush1.msra.mxu0 %v355
        %400 = vmatprep.subr.mxu0 %v358
        %401 = vmatpush1.msra.mxu0 %v357
        %402 = vmatprep.subr.mxu0 %v360
        %403 = vmatpush1.msra.mxu0 %v359
        %404 = vmatprep.subr.mxu0 %v362
        %405 = vmatpush1.msra.mxu0 %v361
        %406 = vmatprep.subr.mxu0 %v364
        %407 = vmatpush1.msra.mxu0 %v363
        %408 = vmatprep.subr.mxu0 %v366
        %409 = vmatpush1.msra.mxu0 %v365
        %410 = vmatprep.subr.mxu0 %v368
        %411 = vmatpush1.msra.mxu0 %v367
        %412 = vmatprep.subr.mxu0 %v370
        %413 = vmatpush1.msra.mxu0 %v369
        %414 = vmatprep.subr.mxu0 %v372
        %415 = vmatpush1.msra.mxu0 %v371
        %416 = vmatprep.subr.mxu0 %v374
        %417 = vmatpush1.msra.mxu0 %v373
        %418 = vmatprep.subr.mxu0 %v376
        %419 = vmatpush1.msra.mxu0 %v375
        %420 = vmatprep.subr.mxu0 %v378
        %421 = vmatpush1.msra.mxu0 %v377
        %422 = vmatprep.subr.mxu0 %v380
        %423 = vmatpush1.msra.mxu0 %v379
        %424 = vmatprep.subr.mxu0 %v382
        %425 = vmatpush1.msra.mxu0 %v381
        %426 = vmatprep.subr.mxu0 0.0
        %427 = vmatpush1.msra.mxu0 0.0
        %428 = vmatprep.subr.mxu0 0.0
        %429 = vmatpush1.msra.mxu0 0.0
        %430 = vmatprep.subr.mxu0 0.0
        %431 = vmatpush1.msra.mxu0 0.0
        %432 = vmatprep.subr.mxu0 0.0
        %433 = vmatpush1.msra.mxu0 0.0
        %434 = vmatprep.subr.mxu0 0.0
        %435 = vmatpush1.msra.mxu0 0.0
        %436 = vmatprep.subr.mxu0 0.0
        %437 = vmatpush1.msra.mxu0 0.0
        %438 = vmatprep.subr.mxu0 0.0
        %439 = vmatpush1.msra.mxu0 0.0
        %440 = vmatprep.subr.mxu0 0.0
        %441 = vmatpush1.msra.mxu0 0.0
        %442 = vmatprep.subr.mxu0 0.0
        %443 = vmatpush1.msra.mxu0 0.0
        %444 = vmatprep.subr.mxu0 0.0
        %445 = vmatpush1.msra.mxu0 0.0
        %446 = vmatprep.subr.mxu0 0.0
        %447 = vmatpush1.msra.mxu0 0.0
        %448 = vmatprep.subr.mxu0 0.0
        %449 = vmatpush1.msra.mxu0 0.0
        %450 = vmatprep.subr.mxu0 0.0
        %451 = vmatpush1.msra.mxu0 0.0
        %452 = vmatprep.subr.mxu0 0.0
        %453 = vmatpush1.msra.mxu0 0.0
        %454 = vmatprep.subr.mxu0 0.0
        %455 = vmatpush1.msra.mxu0 0.0
        %456 = vmatprep.subr.mxu0 0.0
        %457 = vmatpush1.msra.mxu0 0.0
        %458 = vmatprep.mubr.f32.mxu0 0.0
        %459 = vmatmul.mubr.f32.gmra.mrb[0].mxu0 %v335
        %v460 = vpop.f32.mrb[0].mxu0
        %v461 = vadd.f32 %v387, %v460
        %v462 = vpop.f32.mrb[0].mxu0
        %v463 = vadd.f32 %v391, %v462
        %464 = vmatprep.mubr.f32.mxu0 0.0
        %465 = vmatmul.mubr.f32.gmra.mrb[0].mxu0 %v336
        %v466 = vpop.f32.mrb[0].mxu0
        %v467 = vadd.f32 %v387, %v466
        %v468 = vpop.f32.mrb[0].mxu0
        %v469 = vadd.f32 %v391, %v468
        %470 = vmatprep.mubr.f32.mxu0 0.0
        %471 = vmatmul.mubr.f32.gmra.mrb[0].mxu0 %v337
        %v472 = vpop.f32.mrb[0].mxu0
        %v473 = vadd.f32 %v387, %v472
        %v474 = vpop.f32.mrb[0].mxu0
        %v475 = vadd.f32 %v391, %v474
        %476 = vmatprep.mubr.f32.mxu0 0.0
        %477 = vmatmul.mubr.f32.gmra.mrb[0].mxu0 %v338
        %v478 = vpop.f32.mrb[0].mxu0
        %v479 = vadd.f32 %v387, %v478
        %v480 = vpop.f32.mrb[0].mxu0
        %v481 = vadd.f32 %v391, %v480
        %482 = vmatprep.mubr.f32.mxu0 0.0
        %483 = vmatmul.mubr.f32.gmra.mrb[0].mxu0 %v339
        %v484 = vpop.f32.mrb[0].mxu0
        %v485 = vadd.f32 %v387, %v484
        %v486 = vpop.f32.mrb[0].mxu0
        %v487 = vadd.f32 %v391, %v486
        %488 = vmatprep.mubr.f32.mxu0 0.0
        %489 = vmatmul.mubr.f32.gmra.mrb[0].mxu0 %v340
        %v490 = vpop.f32.mrb[0].mxu0
        %v491 = vadd.f32 %v387, %v490
        %v492 = vpop.f32.mrb[0].mxu0
        %v493 = vadd.f32 %v391, %v492
        %494 = vmatprep.mubr.f32.mxu0 0.0
        %495 = vmatmul.mubr.f32.gmra.mrb[0].mxu0 %v341
        %v496 = vpop.f32.mrb[0].mxu0
        %v497 = vadd.f32 %v387, %v496
        %v498 = vpop.f32.mrb[0].mxu0
        %v499 = vadd.f32 %v391, %v498
        %500 = vmatprep.mubr.f32.mxu0 0.0
        %501 = vmatmul.mubr.f32.gmra.mrb[0].mxu0 %v342
        %v502 = vpop.f32.mrb[0].mxu0
        %v503 = vadd.f32 %v387, %v502
        %v504 = vpop.f32.mrb[0].mxu0
        %v505 = vadd.f32 %v391, %v504
        %506 = vmatprep.mubr.f32.mxu0 0.0
        %507 = vmatmul.mubr.f32.gmra.mrb[0].mxu0 %v343
        %v508 = vpop.f32.mrb[0].mxu0
        %v509 = vadd.f32 %v387, %v508
        %v510 = vpop.f32.mrb[0].mxu0
        %v511 = vadd.f32 %v391, %v510
        %512 = vmatprep.mubr.f32.mxu0 0.0
        %513 = vmatmul.mubr.f32.gmra.mrb[0].mxu0 %v344
        %v514 = vpop.f32.mrb[0].mxu0
        %v515 = vadd.f32 %v387, %v514
        %v516 = vpop.f32.mrb[0].mxu0
        %v517 = vadd.f32 %v391, %v516
        %518 = vmatprep.mubr.f32.mxu0 0.0
        %519 = vmatmul.mubr.f32.gmra.mrb[0].mxu0 %v345
        %v520 = vpop.f32.mrb[0].mxu0
        %v521 = vadd.f32 %v387, %v520
        %v522 = vpop.f32.mrb[0].mxu0
        %v523 = vadd.f32 %v391, %v522
        %524 = vmatprep.mubr.f32.mxu0 0.0
        %525 = vmatmul.mubr.f32.gmra.mrb[0].mxu0 %v346
        %v526 = vpop.f32.mrb[0].mxu0
        %v527 = vadd.f32 %v387, %v526
        %v528 = vpop.f32.mrb[0].mxu0
        %v529 = vadd.f32 %v391, %v528
        %530 = vmatprep.mubr.f32.mxu0 0.0
        %531 = vmatmul.mubr.f32.gmra.mrb[0].mxu0 %v347
        %v532 = vpop.f32.mrb[0].mxu0
        %v533 = vadd.f32 %v387, %v532
        %v534 = vpop.f32.mrb[0].mxu0
        %v535 = vadd.f32 %v391, %v534
        %536 = vmatprep.mubr.f32.mxu0 0.0
        %537 = vmatmul.mubr.f32.gmra.mrb[0].mxu0 %v348
        %v538 = vpop.f32.mrb[0].mxu0
        %v539 = vadd.f32 %v387, %v538
        %v540 = vpop.f32.mrb[0].mxu0
        %v541 = vadd.f32 %v391, %v540
        %542 = vmatprep.mubr.f32.mxu0 0.0
        %543 = vmatmul.mubr.f32.gmra.mrb[0].mxu0 %v349
        %v544 = vpop.f32.mrb[0].mxu0
        %v545 = vadd.f32 %v387, %v544
        %v546 = vpop.f32.mrb[0].mxu0
        %v547 = vadd.f32 %v391, %v546
        %548 = vmatprep.mubr.f32.mxu0 0.0
        %549 = vmatmul.mubr.f32.gmra.mrb[0].mxu0 %v350
        %v550 = vpop.f32.mrb[0].mxu0
        %v551 = vadd.f32 %v387, %v550
        %v552 = vpop.f32.mrb[0].mxu0
        %v553 = vadd.f32 %v391, %v552
        %554 = vdwg.mxu0
        %v555 = vtanh.pop %v461
        %v556 = vtanh.pop %v463
        %v557 = vtanh.pop %v467
        %v558 = vtanh.pop %v469
        %v559 = vtanh.pop %v473
        %v560 = vtanh.pop %v475
        %v561 = vtanh.pop %v479
        %v562 = vtanh.pop %v481
        %v563 = vtanh.pop %v485
        %v564 = vtanh.pop %v487
        %v565 = vtanh.pop %v491
        %v566 = vtanh.pop %v493
        %v567 = vtanh.pop %v497
        %v568 = vtanh.pop %v499
        %v569 = vtanh.pop %v503
        %v570 = vtanh.pop %v505
        %v571 = vtanh.pop %v509
        %v572 = vtanh.pop %v511
        %v573 = vtanh.pop %v515
        %v574 = vtanh.pop %v517
        %v575 = vtanh.pop %v521
        %v576 = vtanh.pop %v523
        %v577 = vtanh.pop %v527
        %v578 = vtanh.pop %v529
        %v579 = vtanh.pop %v533
        %v580 = vtanh.pop %v535
        %v581 = vtanh.pop %v539
        %v582 = vtanh.pop %v541
        %v583 = vtanh.pop %v545
        %v584 = vtanh.pop %v547
        %v585 = vtanh.pop %v551
        %v586 = vtanh.pop %v553
        %v587 = vld [vmem:[#allocation8] sm:$0xff]
        %v588 = vld [vmem:[#allocation8 + $0x8] sm:$0xff]
        %v589 = vld [vmem:[#allocation8 + $0x10] sm:$0xff]
        %v590 = vld [vmem:[#allocation8 + $0x18] sm:$0xff]
        %v591 = vld [vmem:[#allocation8 + $0x20] sm:$0xff]
        %v592 = vld [vmem:[#allocation8 + $0x28] sm:$0xff]
        %v593 = vld [vmem:[#allocation8 + $0x30] sm:$0xff]
        %v594 = vld [vmem:[#allocation8 + $0x38] sm:$0xff]
        %v595 = vld [vmem:[#allocation8 + $0x40] sm:$0xff]
        %v596 = vld [vmem:[#allocation8 + $0x48] sm:$0xff]
        %v597 = vld [vmem:[#allocation8 + $0x50] sm:$0xff]
        %v598 = vld [vmem:[#allocation8 + $0x58] sm:$0xff]
        %v599 = vld [vmem:[#allocation8 + $0x60] sm:$0xff]
        %v600 = vld [vmem:[#allocation8 + $0x68] sm:$0xff]
        %v601 = vld [vmem:[#allocation8 + $0x70] sm:$0xff]
        %v602 = vld [vmem:[#allocation8 + $0x78] sm:$0xff]
        %v603 = vld [vmem:[#allocation8 + $0x80] sm:$0xff]
        %v604 = vld [vmem:[#allocation8 + $0x88] sm:$0xff]
        %v605 = vld [vmem:[#allocation8 + $0x90] sm:$0xff]
        %v606 = vld [vmem:[#allocation8 + $0x98] sm:$0xff]
        %v607 = vld [vmem:[#allocation8 + $0xa0] sm:$0xff]
        %v608 = vld [vmem:[#allocation8 + $0xa8] sm:$0xff]
        %v609 = vld [vmem:[#allocation8 + $0xb0] sm:$0xff]
        %v610 = vld [vmem:[#allocation8 + $0xb8] sm:$0xff]
        %v611 = vld [vmem:[#allocation8 + $0xc0] sm:$0xff]
        %v612 = vld [vmem:[#allocation8 + $0xc8] sm:$0xff]
        %v613 = vld [vmem:[#allocation8 + $0xd0] sm:$0xff]
        %v614 = vld [vmem:[#allocation8 + $0xd8] sm:$0xff]
        %v615 = vld [vmem:[#allocation8 + $0xe0] sm:$0xff]
        %v616 = vld [vmem:[#allocation8 + $0xe8] sm:$0xff]
        %v617 = vld [vmem:[#allocation8 + $0xf0] sm:$0xff]
        %v618 = vld [vmem:[#allocation8 + $0xf8] sm:$0xff]
        %v619 = vld [vmem:[%s6] sm:$0x1]
        %v621 = vlaneseq
        %v622 = vshrl.u32 %v621, 7
        %v623 = vsub.s32 0, %v622
        %v624 = vrot.slane %v619, %v623
        %626 = vmatprep.subr.mxu0 0.0
        %627 = vmatpush1.msra.mxu0 %v587
        %628 = vmatprep.subr.mxu0 0.0
        %629 = vmatpush1.msra.mxu0 %v588
        %630 = vmatprep.subr.mxu0 0.0
        %631 = vmatpush1.msra.mxu0 %v589
        %632 = vmatprep.subr.mxu0 0.0
        %633 = vmatpush1.msra.mxu0 %v590
        %634 = vmatprep.subr.mxu0 0.0
        %635 = vmatpush1.msra.mxu0 %v591
        %636 = vmatprep.subr.mxu0 0.0
        %637 = vmatpush1.msra.mxu0 %v592
        %638 = vmatprep.subr.mxu0 0.0
        %639 = vmatpush1.msra.mxu0 %v593
        %640 = vmatprep.subr.mxu0 0.0
        %641 = vmatpush1.msra.mxu0 %v594
        %642 = vmatprep.subr.mxu0 0.0
        %643 = vmatpush1.msra.mxu0 %v595
        %644 = vmatprep.subr.mxu0 0.0
        %645 = vmatpush1.msra.mxu0 %v596
        %646 = vmatprep.subr.mxu0 0.0
        %647 = vmatpush1.msra.mxu0 %v597
        %648 = vmatprep.subr.mxu0 0.0
        %649 = vmatpush1.msra.mxu0 %v598
        %650 = vmatprep.subr.mxu0 0.0
        %651 = vmatpush1.msra.mxu0 %v599
        %652 = vmatprep.subr.mxu0 0.0
        %653 = vmatpush1.msra.mxu0 %v600
        %654 = vmatprep.subr.mxu0 0.0
        %655 = vmatpush1.msra.mxu0 %v601
        %656 = vmatprep.subr.mxu0 0.0
        %657 = vmatpush1.msra.mxu0 %v602
        %658 = vmatprep.subr.mxu0 0.0
        %659 = vmatpush1.msra.mxu0 %v603
        %660 = vmatprep.subr.mxu0 0.0
        %661 = vmatpush1.msra.mxu0 %v604
        %662 = vmatprep.subr.mxu0 0.0
        %663 = vmatpush1.msra.mxu0 %v605
        %664 = vmatprep.subr.mxu0 0.0
        %665 = vmatpush1.msra.mxu0 %v606
        %666 = vmatprep.subr.mxu0 0.0
        %667 = vmatpush1.msra.mxu0 %v607
        %668 = vmatprep.subr.mxu0 0.0
        %669 = vmatpush1.msra.mxu0 %v608
        %670 = vmatprep.subr.mxu0 0.0
        %671 = vmatpush1.msra.mxu0 %v609
        %672 = vmatprep.subr.mxu0 0.0
        %673 = vmatpush1.msra.mxu0 %v610
        %674 = vmatprep.subr.mxu0 0.0
        %675 = vmatpush1.msra.mxu0 %v611
        %676 = vmatprep.subr.mxu0 0.0
        %677 = vmatpush1.msra.mxu0 %v612
        %678 = vmatprep.subr.mxu0 0.0
        %679 = vmatpush1.msra.mxu0 %v613
        %680 = vmatprep.subr.mxu0 0.0
        %681 = vmatpush1.msra.mxu0 %v614
        %682 = vmatprep.subr.mxu0 0.0
        %683 = vmatpush1.msra.mxu0 %v615
        %684 = vmatprep.subr.mxu0 0.0
        %685 = vmatpush1.msra.mxu0 %v616
        %686 = vmatprep.subr.mxu0 0.0
        %687 = vmatpush1.msra.mxu0 %v617
        %688 = vmatprep.subr.mxu0 0.0
        %689 = vmatpush1.msra.mxu0 %v618
        %690 = vmatprep.mubr.f32.mxu0 %v556
        %691 = vmatmul.mubr.f32.gmra.mrb[0].mxu0 %v555
        %v692 = vpop.f32.mrb[0].mxu0
        %v693 = vadd.f32 %v624, %v692
        %v694 = vpop.f32.mrb[0].mxu0
        %695 = vmatprep.mubr.f32.mxu0 %v558
        %696 = vmatmul.mubr.f32.gmra.mrb[0].mxu0 %v557
        %v697 = vpop.f32.mrb[0].mxu0
        %v698 = vadd.f32 %v624, %v697
        %v699 = vpop.f32.mrb[0].mxu0
        %700 = vmatprep.mubr.f32.mxu0 %v560
        %701 = vmatmul.mubr.f32.gmra.mrb[0].mxu0 %v559
        %v702 = vpop.f32.mrb[0].mxu0
        %v703 = vadd.f32 %v624, %v702
        %v704 = vpop.f32.mrb[0].mxu0
        %705 = vmatprep.mubr.f32.mxu0 %v562
        %706 = vmatmul.mubr.f32.gmra.mrb[0].mxu0 %v561
        %v707 = vpop.f32.mrb[0].mxu0
        %v708 = vadd.f32 %v624, %v707
        %v709 = vpop.f32.mrb[0].mxu0
        %710 = vmatprep.mubr.f32.mxu0 %v564
        %711 = vmatmul.mubr.f32.gmra.mrb[0].mxu0 %v563
        %v712 = vpop.f32.mrb[0].mxu0
        %v713 = vadd.f32 %v624, %v712
        %v714 = vpop.f32.mrb[0].mxu0
        %715 = vmatprep.mubr.f32.mxu0 %v566
        %716 = vmatmul.mubr.f32.gmra.mrb[0].mxu0 %v565
        %v717 = vpop.f32.mrb[0].mxu0
        %v718 = vadd.f32 %v624, %v717
        %v719 = vpop.f32.mrb[0].mxu0
        %720 = vmatprep.mubr.f32.mxu0 %v568
        %721 = vmatmul.mubr.f32.gmra.mrb[0].mxu0 %v567
        %v722 = vpop.f32.mrb[0].mxu0
        %v723 = vadd.f32 %v624, %v722
        %v724 = vpop.f32.mrb[0].mxu0
        %725 = vmatprep.mubr.f32.mxu0 %v570
        %726 = vmatmul.mubr.f32.gmra.mrb[0].mxu0 %v569
        %v727 = vpop.f32.mrb[0].mxu0
        %v728 = vadd.f32 %v624, %v727
        %v729 = vpop.f32.mrb[0].mxu0
        %730 = vmatprep.mubr.f32.mxu0 %v572
        %731 = vmatmul.mubr.f32.gmra.mrb[0].mxu0 %v571
        %v732 = vpop.f32.mrb[0].mxu0
        %v733 = vadd.f32 %v624, %v732
        %v734 = vpop.f32.mrb[0].mxu0
        %735 = vmatprep.mubr.f32.mxu0 %v574
        %736 = vmatmul.mubr.f32.gmra.mrb[0].mxu0 %v573
        %v737 = vpop.f32.mrb[0].mxu0
        %v738 = vadd.f32 %v624, %v737
        %v739 = vpop.f32.mrb[0].mxu0
        %740 = vmatprep.mubr.f32.mxu0 %v576
        %741 = vmatmul.mubr.f32.gmra.mrb[0].mxu0 %v575
        %v742 = vpop.f32.mrb[0].mxu0
        %v743 = vadd.f32 %v624, %v742
        %v744 = vpop.f32.mrb[0].mxu0
        %745 = vmatprep.mubr.f32.mxu0 %v578
        %746 = vmatmul.mubr.f32.gmra.mrb[0].mxu0 %v577
        %v747 = vpop.f32.mrb[0].mxu0
        %v748 = vadd.f32 %v624, %v747
        %v749 = vpop.f32.mrb[0].mxu0
        %750 = vmatprep.mubr.f32.mxu0 %v580
        %751 = vmatmul.mubr.f32.gmra.mrb[0].mxu0 %v579
        %v752 = vpop.f32.mrb[0].mxu0
        %v753 = vadd.f32 %v624, %v752
        %v754 = vpop.f32.mrb[0].mxu0
        %755 = vmatprep.mubr.f32.mxu0 %v582
        %756 = vmatmul.mubr.f32.gmra.mrb[0].mxu0 %v581
        %v757 = vpop.f32.mrb[0].mxu0
        %v758 = vadd.f32 %v624, %v757
        %v759 = vpop.f32.mrb[0].mxu0
        %760 = vmatprep.mubr.f32.mxu0 %v584
        %761 = vmatmul.mubr.f32.gmra.mrb[0].mxu0 %v583
        %v762 = vpop.f32.mrb[0].mxu0
        %v763 = vadd.f32 %v624, %v762
        %v764 = vpop.f32.mrb[0].mxu0
        %765 = vmatprep.mubr.f32.mxu0 %v586
        %766 = vmatmul.mubr.f32.gmra.mrb[0].mxu0 %v585
        %v767 = vpop.f32.mrb[0].mxu0
        %v768 = vadd.f32 %v624, %v767
        %v769 = vpop.f32.mrb[0].mxu0
        %770 = vdwg.mxu0
        %771 = vst [vmem:[%s326] sm:$0xff] %v693
        %772 = vst [vmem:[%s326 + $0x8] sm:$0xff] %v698
        %773 = vst [vmem:[%s326 + $0x10] sm:$0xff] %v703
        %774 = vst [vmem:[%s326 + $0x18] sm:$0xff] %v708
        %775 = vst [vmem:[%s326 + $0x20] sm:$0xff] %v713
        %776 = vst [vmem:[%s326 + $0x28] sm:$0xff] %v718
        %777 = vst [vmem:[%s326 + $0x30] sm:$0xff] %v723
        %778 = vst [vmem:[%s326 + $0x38] sm:$0xff] %v728
        %779 = vst [vmem:[%s326 + $0x40] sm:$0xff] %v733
        %780 = vst [vmem:[%s326 + $0x48] sm:$0xff] %v738
        %781 = vst [vmem:[%s326 + $0x50] sm:$0xff] %v743
        %782 = vst [vmem:[%s326 + $0x58] sm:$0xff] %v748
        %783 = vst [vmem:[%s326 + $0x60] sm:$0xff] %v753
        %784 = vst [vmem:[%s326 + $0x68] sm:$0xff] %v758
        %785 = vst [vmem:[%s326 + $0x70] sm:$0xff] %v763
        %786 = vst [vmem:[%s326 + $0x78] sm:$0xff] %v768
        %s787 = sand.u32 %s186, 1
        %s788 = scalar_lea.sflag [#allocation5], %s787
        %s789 = sand.u32 %s186, 1
        %s790 = smul.addr %s789, 128
        %s791 = scalar_lea.vmem [#allocation9], %s790
        // Predicated region
        $region61: #{cnf_forward.1} parent=47 // pred_check
          %p792 = pneg %p196
        $region62: #{cnf_forward.1} parent=47 // pred_check_branch
          %794 = sbr.rel (%p792) target = $region64
        $region63: #{cnf_forward.1} parent=47 // pred_region
          %s795 = smul.u32 16, %s26
          %s797 = ssub.s32 2048, 2048
          %798 = vsyncadd %s788, %s797
          %s799 = smul.addr %s795, 128
          %s800 = scalar_lea.hbm %s7, %s799
          %s801 = sshll.u32 %s791, 4
          %s802 = int_to_ptr.vmem [resolvable:$true] %s801
          %807 = dma.vmem_to_hbm [thread:$0]  %s802, 2048, %s800, %s788, 128, 128, 8
        $region64: #{cnf_forward.1} parent=47 // pred_fallthru
          _
      $region48: #{cnf_forward.1} parent=5 // pred_fallthru
        _
      %p808 = scmp.le.s32.totalorder 2, %s21
      // Predicated region
      $region65: #{cnf_forward.1} parent=5 // pred_check
        %p809 = pneg %p808
      $region66: #{cnf_forward.1} parent=5 // pred_check_branch
        %811 = sbr.rel (%p809) target = $region68
      $region67: #{cnf_forward.1} parent=5 // pred_region
        %s812 = ssub.s32 %s21, 2
        // Predicated region
        $region69: #{cnf_forward.1} parent=67 // pred_check
          %p813 = pneg %p202
        $region70: #{cnf_forward.1} parent=67 // pred_check_branch
          %815 = sbr.rel (%p813) target = $region72
        $region71: #{cnf_forward.1} parent=67 // pred_region
          %s816 = sand.u32 %s187, 1
          %s817 = scalar_lea.sflag [#allocation5], %s816
          %s818 = sand.u32 %s187, 1
          %s819 = smul.addr %s818, 128
          %s820 = scalar_lea.vmem [#allocation9], %s819
          %821 = dma.done %s817, 2048
        $region72: #{cnf_forward.1} parent=67 // pred_fallthru
          _
      $region68: #{cnf_forward.1} parent=5 // pred_fallthru
        _
    $region6: #{cnf_forward.1} parent=1 // loop_footer
      %s25 = sadd.s32 1, %s21
    $region7: #{cnf_forward.1} parent=1 // loop_footer_branch
      %20 = sbr.rel target = $region3
    $region8: #{cnf_forward.1} parent=1 // loop_exit
      _
    %822 = vsyncpa [#allocation4], 1
    %s823 = scalar_lea.sflag [#allocation4], 1
    %824 = vsyncpa %s823, 1
    %825 = vsyncpa [#allocation7], 1
    %826 = vsyncpa [#allocation5], 1
    %s827 = scalar_lea.sflag [#allocation5], 1
    %828 = vsyncpa %s827, 1

</llo_original>
